<compile_context>
chip_gen: v5e
topology: v5e:2x2
jax: 0.10.0
libtpu: 0.0.40
codegen_flags: <defaults>
</compile_context>

<pallas_src>
from functools import partial

import jax
import jax.numpy as jnp
from jax.experimental import pallas as pl
from jax.experimental.pallas import tpu as pltpu

_BLOCK_COLS = 1024   # lane-dense width (multiple of 128)
_BLOCK_ROWS = 512    # 512 x 1024 x 4 B = 2 MiB per f32 block


def _round_up(x, m):
    return ((x + m - 1) // m) * m


def _add_noise_kernel(x_ref, n_ref, o_ref, *, std):
    x = x_ref[...]
    noise = n_ref[...] * jnp.float32(std)
    if x.dtype == jnp.float32:
        o_ref[...] = x + noise                                   # no redundant casts
    else:
        o_ref[...] = (x.astype(jnp.float32) + noise).astype(o_ref.dtype)


def gaussian_noise(x, std, key, training=True):
    """Pallas equivalent of GaussianNoise(std).forward(x) for NCHW (or any) inputs."""
    if not training:
        return x  # eval mode: identity, exactly as in the PyTorch module
    if not jnp.issubdtype(x.dtype, jnp.floating):
        raise ValueError("gaussian_noise expects a floating-point input")

    orig_shape, orig_dtype = x.shape, x.dtype
    total = x.size

    # Lane-dense padded 2-D slab: (rows_padded, 1024).
    cols = _BLOCK_COLS
    rows = pl.cdiv(total, cols)
    block_rows = min(_BLOCK_ROWS, _round_up(rows, 8))
    rows_padded = _round_up(rows, block_rows)
    padded = rows_padded * cols

    x2 = jnp.pad(x.reshape(-1), (0, padded - total)).reshape(rows_padded, cols)
    # Exact pixelwise standard-normal noise (matches torch.normal(0, std) up to scale).
    noise2 = jax.random.normal(key, (rows_padded, cols), dtype=jnp.float32)

    spec = pl.BlockSpec((block_rows, cols), lambda i: (i, 0))

    out2 = pl.pallas_call(
        partial(_add_noise_kernel, std=float(std)),
        out_shape=jax.ShapeDtypeStruct((rows_padded, cols), orig_dtype),
        grid=(rows_padded // block_rows,),
        in_specs=[spec, spec],
        out_specs=spec,
        input_output_aliases={0: 0},   # y overwrites the padded x slab
        compiler_params=pltpu.CompilerParams(
            dimension_semantics=("parallel",),
            vmem_limit_bytes=64 * 1024 * 1024,
        ),
    )(x2, noise2)

    return out2.reshape(-1)[:total].reshape(orig_shape)


if __name__ == "__main__":
    root = jax.random.PRNGKey(0)
    data_key, noise_key = jax.random.split(root)
    x = jax.random.normal(data_key, (2, 4, 16, 16), dtype=jnp.float32)  # NCHW
    std = 0.15

    y = gaussian_noise(x, std=std, key=noise_key, training=True)
    y = jax.block_until_ready(y)

    # Shape/dtype preserved and noise actually added.
    assert y.shape == x.shape and y.dtype == x.dtype
    diff = y - x
    assert float(jnp.max(jnp.abs(diff))) > 0.0
    # Noise statistics should roughly match N(0, std^2).
    assert abs(float(jnp.std(diff)) - std) < 0.05
    assert abs(float(jnp.mean(diff))) < 0.05

    # Eval mode is identity.
    y_eval = gaussian_noise(x, std=std, key=noise_key, training=False)
    assert bool(jnp.array_equal(y_eval, x))

    print("KERNEL_OK")
</pallas_src>

<mosaic_0001>
module attributes {stable_mosaic.version = 11 : i64} {
  func.func @_add_noise_kernel(%arg0: i32, %arg1: memref<8x1024xf32, #tpu.memory_space<vmem>>, %arg2: memref<8x1024xf32, #tpu.memory_space<vmem>>, %arg3: memref<8x1024xf32, #tpu.memory_space<vmem>>) attributes {dimension_semantics = [#tpu.dimension_semantics<parallel>], iteration_bounds = array<i64: 1>, scalar_prefetch = 0 : i64, scratch_operands = 0 : i64, tpu.core_type = #tpu.core_type<tc>, window_params = [{transform_indices = @transform_0, window_bounds = array<i64: 8, 1024>}, {transform_indices = @transform_1, window_bounds = array<i64: 8, 1024>}, {transform_indices = @transform_2, window_bounds = array<i64: 8, 1024>}]} {
    %c0 = arith.constant 0 : index
    %c0_0 = arith.constant 0 : index
    %0 = vector.load %arg1[%c0, %c0_0] : memref<8x1024xf32, #tpu.memory_space<vmem>>, vector<8x1024xf32>
    %c0_1 = arith.constant 0 : index
    %c0_2 = arith.constant 0 : index
    %1 = vector.load %arg2[%c0_1, %c0_2] : memref<8x1024xf32, #tpu.memory_space<vmem>>, vector<8x1024xf32>
    %cst = arith.constant 1.500000e-01 : f32
    %2 = vector.broadcast %cst : f32 to vector<8x1024xf32>
    %3 = arith.mulf %1, %2 : vector<8x1024xf32>
    %4 = arith.addf %0, %3 : vector<8x1024xf32>
    %c0_3 = arith.constant 0 : index
    %c0_4 = arith.constant 0 : index
    %5 = vector.load %arg3[%c0_3, %c0_4] : memref<8x1024xf32, #tpu.memory_space<vmem>>, vector<8x1024xf32>
    tpu.vector_store %arg3[%c0_3, %c0_4], %4 {strides = array<i32>} : memref<8x1024xf32, #tpu.memory_space<vmem>>, vector<8x1024xf32>,
    return
  }
  func.func @transform_0(%arg0: i32) -> (i32, i32) {
    %c0_i32 = arith.constant 0 : i32
    %c0_i32_0 = arith.constant 0 : i32
    return %arg0, %c0_i32 : i32, i32
  }
  func.func @transform_1(%arg0: i32) -> (i32, i32) {
    %c0_i32 = arith.constant 0 : i32
    %c0_i32_0 = arith.constant 0 : i32
    return %arg0, %c0_i32 : i32, i32
  }
  func.func @transform_2(%arg0: i32) -> (i32, i32) {
    %c0_i32 = arith.constant 0 : i32
    %c0_i32_0 = arith.constant 0 : i32
    return %arg0, %c0_i32 : i32, i32
  }
}

</mosaic_0001>

<llo_original>
// kernel: tpu_custom_call.1
$region0: #{tpu_custom_call.1}
  #allocation0 [shape = 'u32[]', space=smem, size = 0x4, offset = 0x4, fixed_abs, tag = 'smem constant byte address 0x4 - core index']
  #allocation1 [shape = 'u32[72,128]{1,0:T(1,128)}', space=vmem, size = 0x9000, scoped, tag = 'internal scratch']
  %s0 = inlined_call_operand.hbm [shape: f32[8,1024], index: 0, kind: input, shape index: {}, may-alias: {0,2}]
  %s1 = inlined_call_operand.vmem [shape: f32[8,1024], index: 1, kind: input, shape index: {}]
  %s2 = inlined_call_operand.hbm [shape: f32[8,1024], index: 2, kind: output, shape index: {}, may-alias: {0,2}]
  %s3 = sld [smem:[#allocation0]]
  $region22: #{tpu_custom_call.1} parent=0
    _
  %s5 = ssub.s32 1, %s3
  %s6 = scalar_select 0, %s5, %s3
  $region1: #{tpu_custom_call.1} parent=0
    #allocation2 [shape = 'u8[32768]{0}', space=vmem, size = 0x8000, scoped, tag = 'input window, operand 0, single buffered']
    #allocation3 [shape = 's32[1]{0}', space=sflag, size = 0x4, scoped, tag = 'scoped memory for tpu_custom_call.1']
    #allocation4 [shape = 's32[1]{0}', space=sflag, size = 0x4, scoped, tag = 'scoped memory for tpu_custom_call.1']
    #allocation5 [shape = 'u8[32768]{0}', space=vmem, size = 0x8000, scoped, tag = 'output window, operand 0, single buffered']
    %7 = vsyncpa [#allocation3], 0
    %8 = vsyncpa [#allocation4], 0
    // Predicated region
    $region2: #{tpu_custom_call.1} parent=1 // pred_check
      _
    $region3: #{tpu_custom_call.1} parent=1 // pred_check_branch
      %10 = sbr.rel (0) target = $region5
    $region4: #{tpu_custom_call.1} parent=1 // pred_region
      %12 = vsyncadd [#allocation3], 0
      %s14 = sshll.u32 %s0, 4
      %s15 = int_to_ptr.hbm [resolvable:$true] %s14
      %s16 = sshll.u32 [#allocation2], 4
      %s17 = int_to_ptr.vmem [resolvable:$true] %s16
      %19 = dma.hbm_to_vmem [thread:$0]  %s15, 1024, %s17, [#allocation3]
    $region5: #{tpu_custom_call.1} parent=1 // pred_fallthru
      _
    // Predicated region
    $region6: #{tpu_custom_call.1} parent=1 // pred_check
      _
    $region7: #{tpu_custom_call.1} parent=1 // pred_check_branch
      %21 = sbr.rel (0) target = $region9
    $region8: #{tpu_custom_call.1} parent=1 // pred_region
      _
    $region9: #{tpu_custom_call.1} parent=1 // pred_fallthru
      _
    // Predicated region
    $region10: #{tpu_custom_call.1} parent=1 // pred_check
      _
    $region11: #{tpu_custom_call.1} parent=1 // pred_check_branch
      %23 = sbr.rel (0) target = $region13
    $region12: #{tpu_custom_call.1} parent=1 // pred_region
      %25 = dma.done [#allocation3], 1024
    $region13: #{tpu_custom_call.1} parent=1 // pred_fallthru
      _
    %v26 = vld [vmem:[#allocation2] sm:$0xff]
    %v27 = vld [vmem:[#allocation2 + $0x8] sm:$0xff]
    %v28 = vld [vmem:[#allocation2 + $0x10] sm:$0xff]
    %v29 = vld [vmem:[#allocation2 + $0x18] sm:$0xff]
    %v30 = vld [vmem:[#allocation2 + $0x20] sm:$0xff]
    %v31 = vld [vmem:[#allocation2 + $0x28] sm:$0xff]
    %v32 = vld [vmem:[#allocation2 + $0x30] sm:$0xff]
    %v33 = vld [vmem:[#allocation2 + $0x38] sm:$0xff]
    %v34 = vld [vmem:[%s1] sm:$0xff]
    %v35 = vld [vmem:[%s1 + $0x8] sm:$0xff]
    %v36 = vld [vmem:[%s1 + $0x10] sm:$0xff]
    %v37 = vld [vmem:[%s1 + $0x18] sm:$0xff]
    %v38 = vld [vmem:[%s1 + $0x20] sm:$0xff]
    %v39 = vld [vmem:[%s1 + $0x28] sm:$0xff]
    %v40 = vld [vmem:[%s1 + $0x30] sm:$0xff]
    %v41 = vld [vmem:[%s1 + $0x38] sm:$0xff]
    %v42 = vmul.f32 %v34, 0.15
    %v43 = vmul.f32 %v35, 0.15
    %v44 = vmul.f32 %v36, 0.15
    %v45 = vmul.f32 %v37, 0.15
    %v46 = vmul.f32 %v38, 0.15
    %v47 = vmul.f32 %v39, 0.15
    %v48 = vmul.f32 %v40, 0.15
    %v49 = vmul.f32 %v41, 0.15
    %v50 = vadd.f32 %v26, %v42
    %v51 = vadd.f32 %v27, %v43
    %v52 = vadd.f32 %v28, %v44
    %v53 = vadd.f32 %v29, %v45
    %v54 = vadd.f32 %v30, %v46
    %v55 = vadd.f32 %v31, %v47
    %v56 = vadd.f32 %v32, %v48
    %v57 = vadd.f32 %v33, %v49
    %58 = vst [vmem:[#allocation5] sm:$0xff] %v50
    %59 = vst [vmem:[#allocation5 + $0x8] sm:$0xff] %v51
    %60 = vst [vmem:[#allocation5 + $0x10] sm:$0xff] %v52
    %61 = vst [vmem:[#allocation5 + $0x18] sm:$0xff] %v53
    %62 = vst [vmem:[#allocation5 + $0x20] sm:$0xff] %v54
    %63 = vst [vmem:[#allocation5 + $0x28] sm:$0xff] %v55
    %64 = vst [vmem:[#allocation5 + $0x30] sm:$0xff] %v56
    %65 = vst [vmem:[#allocation5 + $0x38] sm:$0xff] %v57
    // Predicated region
    $region14: #{tpu_custom_call.1} parent=1 // pred_check
      _
    $region15: #{tpu_custom_call.1} parent=1 // pred_check_branch
      %67 = sbr.rel (0) target = $region17
    $region16: #{tpu_custom_call.1} parent=1 // pred_region
      %69 = vsyncadd [#allocation4], 0
      %s71 = sshll.u32 [#allocation5], 4
      %s72 = int_to_ptr.vmem [resolvable:$true] %s71
      %s73 = sshll.u32 %s2, 4
      %s74 = int_to_ptr.hbm [resolvable:$true] %s73
      %76 = dma.vmem_to_hbm [thread:$0]  %s72, 1024, %s74, [#allocation4]
    $region17: #{tpu_custom_call.1} parent=1 // pred_fallthru
      _
    // Predicated region
    $region18: #{tpu_custom_call.1} parent=1 // pred_check
      _
    $region19: #{tpu_custom_call.1} parent=1 // pred_check_branch
      %78 = sbr.rel (0) target = $region21
    $region20: #{tpu_custom_call.1} parent=1 // pred_region
      %80 = dma.done [#allocation4], 1024
    $region21: #{tpu_custom_call.1} parent=1 // pred_fallthru
      _
    %81 = vsyncpa [#allocation3], 1
    %82 = vsyncpa [#allocation4], 1

</llo_original>
